<compile_context>
chip_gen: v6e
topology: v6e:2x2x1
jax: 0.10.0
libtpu: 0.0.40
codegen_flags: <defaults>
</compile_context>

<pallas_src>
import jax
import jax.numpy as jnp
from jax.experimental import pallas as pl
from jax.experimental.pallas import tpu as pltpu

IN_FEATURES = 28 * 28   # 784
HIDDEN = 64
NUM_CLASSES = 10
CLASS_PAD = 128         # lane-dense output width (multiple of 128)


def _round_up(n, m):
    return ((n + m - 1) // m) * m


def mlp_kernel(x_ref,
               w1_ref, b1_ref,
               w2_ref, b2_ref,
               w3_ref, b3_ref,
               w4_ref, b4_ref,
               o_ref):
    """One batch tile: 4 fused matmuls + ReLUs + log_softmax, all VMEM-resident."""
    cdt = w1_ref.dtype  # matmul-operand dtype (f32 or bf16); accumulation is f32

    # Cast the x tile in-kernel (free VPU work under the DMA); no wrapper-side
    # HBM copy of x.  If x already arrives in `cdt`, this is a no-op.
    x = x_ref[...].astype(cdt)

    h = jnp.dot(x, w1_ref[...],
                preferred_element_type=jnp.float32) + b1_ref[...]
    h = jnp.maximum(h, 0.0).astype(cdt)

    h = jnp.dot(h, w2_ref[...],
                preferred_element_type=jnp.float32) + b2_ref[...]
    h = jnp.maximum(h, 0.0).astype(cdt)

    h = jnp.dot(h, w3_ref[...],
                preferred_element_type=jnp.float32) + b3_ref[...]
    h = jnp.maximum(h, 0.0).astype(cdt)

    # (TB, 128) logits; padded class columns carry -inf from the padded bias.
    logits = jnp.dot(h, w4_ref[...],
                     preferred_element_type=jnp.float32) + b4_ref[...]

    # Numerically stable log_softmax along the class axis.
    # Padded columns: exp(-inf) = 0, so they never perturb the real 10 classes.
    m = jnp.max(logits, axis=-1, keepdims=True)
    shifted = logits - m
    lse = jnp.log(jnp.sum(jnp.exp(shifted), axis=-1, keepdims=True))
    o_ref[...] = (shifted - lse).astype(o_ref.dtype)


def prepare_params(params, *, compute_dtype=jnp.float32):
    """One-time parameter prep (hoisted out of the per-call path).

    Pads fc4 to 128 lane-dense output columns (weights 0, bias -inf) and casts
    the weights to the matmul compute dtype.  Biases stay f32 (added to the
    f32 accumulator).
    """
    (w1, b1), (w2, b2), (w3, b3), (w4, b4) = params
    w4p = jnp.zeros((HIDDEN, CLASS_PAD), w4.dtype).at[:, :NUM_CLASSES].set(w4)
    b4p = jnp.full((1, CLASS_PAD), -jnp.inf,
                   dtype=jnp.float32).at[:, :NUM_CLASSES].set(jnp.reshape(b4, (1, -1)))
    ws = tuple(w.astype(compute_dtype) for w in (w1, w2, w3, w4p))
    bs = tuple(jnp.asarray(b, jnp.float32).reshape(1, -1) for b in (b1, b2, b3, b4p))
    return ws, bs


def net_forward(x, prepared, *, tile_b=1024, out_dtype=jnp.float32,
                slice_classes=True, vmem_limit_bytes=None):
    """x: [B, 784] (f32 or bf16) -> [B, 10] log-probabilities.

    `prepared` comes from `prepare_params`.  Set `slice_classes=False` to get
    the padded [B, 128] slab and defer the [:, :10] slice to the consumer
    (avoids an extra HBM re-read right after the kernel).
    """
    (w1, w2, w3, w4), (b1, b2, b3, b4) = prepared
    B = x.shape[0]

    # Batch tile: multiple of 8 sublanes, capped by the (rounded-up) batch.
    TB = min(_round_up(tile_b, 8), _round_up(B, 8))
    grid = (pl.cdiv(B, TB),)     # ragged last block handled by Pallas masking

    x_spec = pl.BlockSpec((TB, IN_FEATURES), lambda i: (i, 0))
    out_spec = pl.BlockSpec((TB, CLASS_PAD), lambda i: (i, 0))
    # Weights/biases: constant index_map -> fetched once, VMEM-resident
    # across all grid steps.
    resident = lambda shape: pl.BlockSpec(shape, lambda i: (0, 0))

    cp_kwargs = dict(dimension_semantics=("parallel",))  # megacore / v7x 2-TC
    if vmem_limit_bytes is not None:
        cp_kwargs["vmem_limit_bytes"] = int(vmem_limit_bytes)

    out = pl.pallas_call(
        mlp_kernel,
        out_shape=jax.ShapeDtypeStruct((B, CLASS_PAD), out_dtype),
        grid=grid,
        in_specs=[
            x_spec,
            resident((IN_FEATURES, HIDDEN)), resident((1, HIDDEN)),
            resident((HIDDEN, HIDDEN)),      resident((1, HIDDEN)),
            resident((HIDDEN, HIDDEN)),      resident((1, HIDDEN)),
            resident((HIDDEN, CLASS_PAD)),   resident((1, CLASS_PAD)),
        ],
        out_specs=out_spec,
        compiler_params=pltpu.CompilerParams(**cp_kwargs),
    )(x, w1, b1, w2, b2, w3, b3, w4, b4)

    return out[:, :NUM_CLASSES] if slice_classes else out


def init_params(key):
    """Deterministic init mimicking PyTorch nn.Linear default (uniform(+-1/sqrt(fan_in)))."""
    dims = [(IN_FEATURES, HIDDEN), (HIDDEN, HIDDEN), (HIDDEN, HIDDEN), (HIDDEN, NUM_CLASSES)]
    params = []
    for (fan_in, fan_out) in dims:
        key, kw, kb = jax.random.split(key, 3)
        bound = 1.0 / (fan_in ** 0.5)
        w = jax.random.uniform(kw, (fan_in, fan_out), jnp.float32, -bound, bound)
        b = jax.random.uniform(kb, (1, fan_out), jnp.float32, -bound, bound)
        params.append((w, b))
    return params


def reference_forward(x, params, compute_dtype=jnp.float32):
    """Pure-JAX reference mirroring the kernel's dtype handling."""
    (w1, b1), (w2, b2), (w3, b3), (w4, b4) = params
    c = lambda a: a.astype(compute_dtype)
    h = jnp.maximum(jnp.dot(c(x), c(w1), preferred_element_type=jnp.float32) + b1, 0.0)
    h = jnp.maximum(jnp.dot(c(h), c(w2), preferred_element_type=jnp.float32) + b2, 0.0)
    h = jnp.maximum(jnp.dot(c(h), c(w3), preferred_element_type=jnp.float32) + b3, 0.0)
    logits = jnp.dot(c(h), c(w4), preferred_element_type=jnp.float32) + b4
    return jax.nn.log_softmax(logits, axis=1)


if __name__ == "__main__":
    key = jax.random.PRNGKey(0)
    key, kx, kx2 = jax.random.split(key, 3)

    B = 8
    x = jax.random.normal(kx, (B, IN_FEATURES), dtype=jnp.float32)
    params = init_params(key)

    # f32 compute path: tight check against the f32 reference.
    prep_f32 = prepare_params(params, compute_dtype=jnp.float32)
    out = jax.block_until_ready(net_forward(x, prep_f32))
    ref = reference_forward(x, params)
    assert out.shape == (B, NUM_CLASSES)
    assert jnp.allclose(out, ref, atol=1e-5, rtol=1e-5)

    # Ragged batch (B not a multiple of the tile / of 8): cdiv grid + masked
    # ragged last block, no host-side padding copy of x.
    B2 = 13
    x2 = jax.random.normal(kx2, (B2, IN_FEATURES), dtype=jnp.float32)
    out2 = jax.block_until_ready(net_forward(x2, prep_f32))
    ref2 = reference_forward(x2, params)
    assert out2.shape == (B2, NUM_CLASSES)
    assert jnp.allclose(out2, ref2, atol=1e-5, rtol=1e-5)

    # bf16 compute path (in-kernel cast of the x tile; weights pre-cast once).
    # Check against a matching bf16-operand / f32-accumulate reference.
    prep_bf16 = prepare_params(params, compute_dtype=jnp.bfloat16)
    out_bf16 = jax.block_until_ready(net_forward(x, prep_bf16))
    ref_bf16 = reference_forward(x, params, compute_dtype=jnp.bfloat16)
    assert out_bf16.shape == (B, NUM_CLASSES)
    assert jnp.allclose(out_bf16, ref_bf16, atol=2e-2, rtol=2e-2)

    # bf16 output writeback (halves output HBM bytes); slice deferred to caller.
    out_bf16o = jax.block_until_ready(
        net_forward(x, prep_bf16, out_dtype=jnp.bfloat16, slice_classes=False))
    assert out_bf16o.shape == (B, CLASS_PAD)
    assert jnp.allclose(out_bf16o[:, :NUM_CLASSES].astype(jnp.float32),
                        ref_bf16, atol=5e-2, rtol=5e-2)

    print("KERNEL_OK")
</pallas_src>

<mosaic_0001>
module attributes {stable_mosaic.version = 11 : i64} {
  func.func @mlp_kernel(%arg0: i32, %arg1: memref<8x784xf32, #tpu.memory_space<vmem>>, %arg2: memref<784x64xf32, #tpu.memory_space<vmem>>, %arg3: memref<1x64xf32, #tpu.memory_space<vmem>>, %arg4: memref<64x64xf32, #tpu.memory_space<vmem>>, %arg5: memref<1x64xf32, #tpu.memory_space<vmem>>, %arg6: memref<64x64xf32, #tpu.memory_space<vmem>>, %arg7: memref<1x64xf32, #tpu.memory_space<vmem>>, %arg8: memref<64x128xf32, #tpu.memory_space<vmem>>, %arg9: memref<1x128xf32, #tpu.memory_space<vmem>>, %arg10: memref<8x128xf32, #tpu.memory_space<vmem>>) attributes {dimension_semantics = [#tpu.dimension_semantics<parallel>], iteration_bounds = array<i64: 1>, scalar_prefetch = 0 : i64, scratch_operands = 0 : i64, tpu.core_type = #tpu.core_type<tc>, window_params = [{transform_indices = @transform_0, window_bounds = array<i64: 8, 784>}, {pipeline_mode = #tpu.pipeline_mode<synchronous>, transform_indices = @transform_1, window_bounds = array<i64: 784, 64>}, {pipeline_mode = #tpu.pipeline_mode<synchronous>, transform_indices = @transform_2, window_bounds = array<i64: 1, 64>}, {pipeline_mode = #tpu.pipeline_mode<synchronous>, transform_indices = @transform_3, window_bounds = array<i64: 64, 64>}, {pipeline_mode = #tpu.pipeline_mode<synchronous>, transform_indices = @transform_4, window_bounds = array<i64: 1, 64>}, {pipeline_mode = #tpu.pipeline_mode<synchronous>, transform_indices = @transform_5, window_bounds = array<i64: 64, 64>}, {pipeline_mode = #tpu.pipeline_mode<synchronous>, transform_indices = @transform_6, window_bounds = array<i64: 1, 64>}, {pipeline_mode = #tpu.pipeline_mode<synchronous>, transform_indices = @transform_7, window_bounds = array<i64: 64, 128>}, {pipeline_mode = #tpu.pipeline_mode<synchronous>, transform_indices = @transform_8, window_bounds = array<i64: 1, 128>}, {transform_indices = @transform_9, window_bounds = array<i64: 8, 128>}]} {
    %c0 = arith.constant 0 : index
    %c0_0 = arith.constant 0 : index
    %0 = vector.load %arg1[%c0, %c0_0] : memref<8x784xf32, #tpu.memory_space<vmem>>, vector<8x784xf32>
    %c0_1 = arith.constant 0 : index
    %c0_2 = arith.constant 0 : index
    %1 = vector.load %arg2[%c0_1, %c0_2] : memref<784x64xf32, #tpu.memory_space<vmem>>, vector<784x64xf32>
    %cst = arith.constant dense<0.000000e+00> : vector<8x64xf32>
    %2 = tpu.matmul %0, %1, %cst {dimension_numbers = #tpu.dot_dimension_numbers<[1], [0], [0], [1], [0, 0, 1, 1], [], []>} : vector<8x784xf32>, vector<784x64xf32>, vector<8x64xf32> -> vector<8x64xf32>
    %c0_3 = arith.constant 0 : index
    %c0_4 = arith.constant 0 : index
    %3 = vector.load %arg3[%c0_3, %c0_4] : memref<1x64xf32, #tpu.memory_space<vmem>>, vector<1x64xf32>
    %4 = vector.broadcast %3 : vector<1x64xf32> to vector<8x64xf32>
    %5 = arith.addf %2, %4 : vector<8x64xf32>
    %cst_5 = arith.constant 0.000000e+00 : f32
    %6 = vector.broadcast %cst_5 : f32 to vector<8x64xf32>
    %7 = arith.maximumf %5, %6 : vector<8x64xf32>
    %c0_6 = arith.constant 0 : index
    %c0_7 = arith.constant 0 : index
    %8 = vector.load %arg4[%c0_6, %c0_7] : memref<64x64xf32, #tpu.memory_space<vmem>>, vector<64x64xf32>
    %cst_8 = arith.constant dense<0.000000e+00> : vector<8x64xf32>
    %9 = tpu.matmul %7, %8, %cst_8 {dimension_numbers = #tpu.dot_dimension_numbers<[1], [0], [0], [1], [0, 0, 1, 1], [], []>} : vector<8x64xf32>, vector<64x64xf32>, vector<8x64xf32> -> vector<8x64xf32>
    %c0_9 = arith.constant 0 : index
    %c0_10 = arith.constant 0 : index
    %10 = vector.load %arg5[%c0_9, %c0_10] : memref<1x64xf32, #tpu.memory_space<vmem>>, vector<1x64xf32>
    %11 = vector.broadcast %10 : vector<1x64xf32> to vector<8x64xf32>
    %12 = arith.addf %9, %11 : vector<8x64xf32>
    %cst_11 = arith.constant 0.000000e+00 : f32
    %13 = vector.broadcast %cst_11 : f32 to vector<8x64xf32>
    %14 = arith.maximumf %12, %13 : vector<8x64xf32>
    %c0_12 = arith.constant 0 : index
    %c0_13 = arith.constant 0 : index
    %15 = vector.load %arg6[%c0_12, %c0_13] : memref<64x64xf32, #tpu.memory_space<vmem>>, vector<64x64xf32>
    %cst_14 = arith.constant dense<0.000000e+00> : vector<8x64xf32>
    %16 = tpu.matmul %14, %15, %cst_14 {dimension_numbers = #tpu.dot_dimension_numbers<[1], [0], [0], [1], [0, 0, 1, 1], [], []>} : vector<8x64xf32>, vector<64x64xf32>, vector<8x64xf32> -> vector<8x64xf32>
    %c0_15 = arith.constant 0 : index
    %c0_16 = arith.constant 0 : index
    %17 = vector.load %arg7[%c0_15, %c0_16] : memref<1x64xf32, #tpu.memory_space<vmem>>, vector<1x64xf32>
    %18 = vector.broadcast %17 : vector<1x64xf32> to vector<8x64xf32>
    %19 = arith.addf %16, %18 : vector<8x64xf32>
    %cst_17 = arith.constant 0.000000e+00 : f32
    %20 = vector.broadcast %cst_17 : f32 to vector<8x64xf32>
    %21 = arith.maximumf %19, %20 : vector<8x64xf32>
    %c0_18 = arith.constant 0 : index
    %c0_19 = arith.constant 0 : index
    %22 = vector.load %arg8[%c0_18, %c0_19] : memref<64x128xf32, #tpu.memory_space<vmem>>, vector<64x128xf32>
    %cst_20 = arith.constant dense<0.000000e+00> : vector<8x128xf32>
    %23 = tpu.matmul %21, %22, %cst_20 {dimension_numbers = #tpu.dot_dimension_numbers<[1], [0], [0], [1], [0, 0, 1, 1], [], []>} : vector<8x64xf32>, vector<64x128xf32>, vector<8x128xf32> -> vector<8x128xf32>
    %c0_21 = arith.constant 0 : index
    %c0_22 = arith.constant 0 : index
    %24 = vector.load %arg9[%c0_21, %c0_22] : memref<1x128xf32, #tpu.memory_space<vmem>>, vector<1x128xf32>
    %25 = vector.broadcast %24 : vector<1x128xf32> to vector<8x128xf32>
    %26 = arith.addf %23, %25 : vector<8x128xf32>
    %cst_23 = arith.constant dense<0xFF800000> : vector<8xf32>
    %27 = vector.multi_reduction <maximumf>, %26, %cst_23 [1] : vector<8x128xf32> to vector<8xf32>
    %28 = vector.shape_cast %27 : vector<8xf32> to vector<8x1xf32>
    %29 = vector.broadcast %28 : vector<8x1xf32> to vector<8x128xf32>
    %30 = arith.subf %26, %29 : vector<8x128xf32>
    %31 = math.exp %30 : vector<8x128xf32>
    %cst_24 = arith.constant dense<0.000000e+00> : vector<8xf32>
    %32 = vector.multi_reduction <add>, %31, %cst_24 [1] : vector<8x128xf32> to vector<8xf32>
    %33 = vector.shape_cast %32 : vector<8xf32> to vector<8x1xf32>
    %34 = math.log %33 : vector<8x1xf32>
    %35 = vector.broadcast %34 : vector<8x1xf32> to vector<8x128xf32>
    %36 = arith.subf %30, %35 : vector<8x128xf32>
    %c0_25 = arith.constant 0 : index
    %c0_26 = arith.constant 0 : index
    %37 = vector.load %arg10[%c0_25, %c0_26] : memref<8x128xf32, #tpu.memory_space<vmem>>, vector<8x128xf32>
    tpu.vector_store %arg10[%c0_25, %c0_26], %36 {strides = array<i32>} : memref<8x128xf32, #tpu.memory_space<vmem>>, vector<8x128xf32>,
    return
  }
  func.func @transform_0(%arg0: i32) -> (i32, i32) {
    %c0_i32 = arith.constant 0 : i32
    %c0_i32_0 = arith.constant 0 : i32
    return %arg0, %c0_i32 : i32, i32
  }
  func.func @transform_1(%arg0: i32) -> (i32, i32) {
    %c0_i32 = arith.constant 0 : i32
    %c0_i32_0 = arith.constant 0 : i32
    %c0_i32_1 = arith.constant 0 : i32
    return %c0_i32, %c0_i32_0 : i32, i32
  }
  func.func @transform_2(%arg0: i32) -> (i32, i32) {
    %c0_i32 = arith.constant 0 : i32
    %c0_i32_0 = arith.constant 0 : i32
    %c0_i32_1 = arith.constant 0 : i32
    return %c0_i32, %c0_i32_0 : i32, i32
  }
  func.func @transform_3(%arg0: i32) -> (i32, i32) {
    %c0_i32 = arith.constant 0 : i32
    %c0_i32_0 = arith.constant 0 : i32
    %c0_i32_1 = arith.constant 0 : i32
    return %c0_i32, %c0_i32_0 : i32, i32
  }
  func.func @transform_4(%arg0: i32) -> (i32, i32) {
    %c0_i32 = arith.constant 0 : i32
    %c0_i32_0 = arith.constant 0 : i32
    %c0_i32_1 = arith.constant 0 : i32
    return %c0_i32, %c0_i32_0 : i32, i32
  }
  func.func @transform_5(%arg0: i32) -> (i32, i32) {
    %c0_i32 = arith.constant 0 : i32
    %c0_i32_0 = arith.constant 0 : i32
    %c0_i32_1 = arith.constant 0 : i32
    return %c0_i32, %c0_i32_0 : i32, i32
  }
  func.func @transform_6(%arg0: i32) -> (i32, i32) {
    %c0_i32 = arith.constant 0 : i32
    %c0_i32_0 = arith.constant 0 : i32
    %c0_i32_1 = arith.constant 0 : i32
    return %c0_i32, %c0_i32_0 : i32, i32
  }
  func.func @transform_7(%arg0: i32) -> (i32, i32) {
    %c0_i32 = arith.constant 0 : i32
    %c0_i32_0 = arith.constant 0 : i32
    %c0_i32_1 = arith.constant 0 : i32
    return %c0_i32, %c0_i32_0 : i32, i32
  }
  func.func @transform_8(%arg0: i32) -> (i32, i32) {
    %c0_i32 = arith.constant 0 : i32
    %c0_i32_0 = arith.constant 0 : i32
    %c0_i32_1 = arith.constant 0 : i32
    return %c0_i32, %c0_i32_0 : i32, i32
  }
  func.func @transform_9(%arg0: i32) -> (i32, i32) {
    %c0_i32 = arith.constant 0 : i32
    %c0_i32_0 = arith.constant 0 : i32
    return %arg0, %c0_i32 : i32, i32
  }
}

</mosaic_0001>

<llo_original>
// kernel: tpu_custom_call.1
$region0: #{tpu_custom_call.1}
  #allocation0 [shape = 'u32[]', space=smem, size = 0x4, offset = 0x4, fixed_abs, tag = 'smem constant byte address 0x4 - core index']
  #allocation1 [shape = 'u32[144,128]{1,0:T(1,128)}', space=vmem, size = 0x12000, scoped, tag = 'internal scratch']
  %s0 = inlined_call_operand.vmem [shape: f32[8,784], index: 0, kind: input, shape index: {}]
  %s1 = inlined_call_operand.vmem [shape: f32[784,64], index: 1, kind: input, shape index: {}]
  %s2 = inlined_call_operand.vmem [shape: f32[1,64], index: 2, kind: input, shape index: {}]
  %s3 = inlined_call_operand.vmem [shape: f32[64,64], index: 3, kind: input, shape index: {}]
  %s4 = inlined_call_operand.vmem [shape: f32[1,64], index: 4, kind: input, shape index: {}]
  %s5 = inlined_call_operand.vmem [shape: f32[64,64], index: 5, kind: input, shape index: {}]
  %s6 = inlined_call_operand.vmem [shape: f32[1,64], index: 6, kind: input, shape index: {}]
  %s7 = inlined_call_operand.vmem [shape: f32[64,128], index: 7, kind: input, shape index: {}]
  %s8 = inlined_call_operand.vmem [shape: f32[1,128], index: 8, kind: input, shape index: {}]
  %s9 = inlined_call_operand.hbm [shape: f32[8,128], index: 9, kind: output, shape index: {}]
  %s10 = sld [smem:[#allocation0]]
  $region46: #{tpu_custom_call.1} parent=0
    _
  %s12 = ssub.s32 1, %s10
  %s13 = scalar_select 0, %s12, %s10
  $region1: #{tpu_custom_call.1} parent=0
    #allocation2 [shape = 'u8[4096]{0}', space=vmem, size = 0x1000, scoped, tag = 'output window, operand 0, single buffered']
    #allocation3 [shape = 's32[1]{0}', space=sflag, size = 0x4, scoped, tag = 'scoped memory for tpu_custom_call.1']
    %14 = vsyncpa [#allocation3], 0
    // Predicated region
    $region2: #{tpu_custom_call.1} parent=1 // pred_check
      _
    $region3: #{tpu_custom_call.1} parent=1 // pred_check_branch
      %16 = sbr.rel (0) target = $region5
    $region4: #{tpu_custom_call.1} parent=1 // pred_region
      _
    $region5: #{tpu_custom_call.1} parent=1 // pred_fallthru
      _
    // Predicated region
    $region6: #{tpu_custom_call.1} parent=1 // pred_check
      _
    $region7: #{tpu_custom_call.1} parent=1 // pred_check_branch
      %18 = sbr.rel (0) target = $region9
    $region8: #{tpu_custom_call.1} parent=1 // pred_region
      _
    $region9: #{tpu_custom_call.1} parent=1 // pred_fallthru
      _
    // Predicated region
    $region10: #{tpu_custom_call.1} parent=1 // pred_check
      _
    $region11: #{tpu_custom_call.1} parent=1 // pred_check_branch
      %20 = sbr.rel (0) target = $region13
    $region12: #{tpu_custom_call.1} parent=1 // pred_region
      _
    $region13: #{tpu_custom_call.1} parent=1 // pred_fallthru
      _
    // Predicated region
    $region14: #{tpu_custom_call.1} parent=1 // pred_check
      _
    $region15: #{tpu_custom_call.1} parent=1 // pred_check_branch
      %22 = sbr.rel (0) target = $region17
    $region16: #{tpu_custom_call.1} parent=1 // pred_region
      _
    $region17: #{tpu_custom_call.1} parent=1 // pred_fallthru
      _
    // Predicated region
    $region18: #{tpu_custom_call.1} parent=1 // pred_check
      _
    $region19: #{tpu_custom_call.1} parent=1 // pred_check_branch
      %24 = sbr.rel (0) target = $region21
    $region20: #{tpu_custom_call.1} parent=1 // pred_region
      _
    $region21: #{tpu_custom_call.1} parent=1 // pred_fallthru
      _
    // Predicated region
    $region22: #{tpu_custom_call.1} parent=1 // pred_check
      _
    $region23: #{tpu_custom_call.1} parent=1 // pred_check_branch
      %26 = sbr.rel (0) target = $region25
    $region24: #{tpu_custom_call.1} parent=1 // pred_region
      _
    $region25: #{tpu_custom_call.1} parent=1 // pred_fallthru
      _
    // Predicated region
    $region26: #{tpu_custom_call.1} parent=1 // pred_check
      _
    $region27: #{tpu_custom_call.1} parent=1 // pred_check_branch
      %28 = sbr.rel (0) target = $region29
    $region28: #{tpu_custom_call.1} parent=1 // pred_region
      _
    $region29: #{tpu_custom_call.1} parent=1 // pred_fallthru
      _
    // Predicated region
    $region30: #{tpu_custom_call.1} parent=1 // pred_check
      _
    $region31: #{tpu_custom_call.1} parent=1 // pred_check_branch
      %30 = sbr.rel (0) target = $region33
    $region32: #{tpu_custom_call.1} parent=1 // pred_region
      _
    $region33: #{tpu_custom_call.1} parent=1 // pred_fallthru
      _
    // Predicated region
    $region34: #{tpu_custom_call.1} parent=1 // pred_check
      _
    $region35: #{tpu_custom_call.1} parent=1 // pred_check_branch
      %32 = sbr.rel (0) target = $region37
    $region36: #{tpu_custom_call.1} parent=1 // pred_region
      _
    $region37: #{tpu_custom_call.1} parent=1 // pred_fallthru
      _
    %v33 = vld [vmem:[%s0] sm:$0xff]
    %v34 = vld [vmem:[%s0 + $0x8] sm:$0xff]
    %v35 = vld [vmem:[%s0 + $0x10] sm:$0xff]
    %v36 = vld [vmem:[%s0 + $0x18] sm:$0xff]
    %v37 = vld [vmem:[%s0 + $0x20] sm:$0xff]
    %v38 = vld [vmem:[%s0 + $0x28] sm:$0xff]
    %v39 = vld [vmem:[%s0 + $0x30] sm:$0xff]
    %v40 = vld [vmem:[%s1] sm:$0xff]
    %v41 = vld [vmem:[%s1 + $0x8] sm:$0xff]
    %v42 = vld [vmem:[%s1 + $0x10] sm:$0xff]
    %v43 = vld [vmem:[%s1 + $0x18] sm:$0xff]
    %v44 = vld [vmem:[%s1 + $0x20] sm:$0xff]
    %v45 = vld [vmem:[%s1 + $0x28] sm:$0xff]
    %v46 = vld [vmem:[%s1 + $0x30] sm:$0xff]
    %v47 = vld [vmem:[%s1 + $0x38] sm:$0xff]
    %v48 = vld [vmem:[%s1 + $0x40] sm:$0xff]
    %v49 = vld [vmem:[%s1 + $0x48] sm:$0xff]
    %v50 = vld [vmem:[%s1 + $0x50] sm:$0xff]
    %v51 = vld [vmem:[%s1 + $0x58] sm:$0xff]
    %v52 = vld [vmem:[%s1 + $0x60] sm:$0xff]
    %v53 = vld [vmem:[%s1 + $0x68] sm:$0xff]
    %v54 = vld [vmem:[%s1 + $0x70] sm:$0xff]
    %v55 = vld [vmem:[%s1 + $0x78] sm:$0xff]
    %v56 = vld [vmem:[%s1 + $0x80] sm:$0xff]
    %v57 = vld [vmem:[%s1 + $0x88] sm:$0xff]
    %v58 = vld [vmem:[%s1 + $0x90] sm:$0xff]
    %v59 = vld [vmem:[%s1 + $0x98] sm:$0xff]
    %v60 = vld [vmem:[%s1 + $0xa0] sm:$0xff]
    %v61 = vld [vmem:[%s1 + $0xa8] sm:$0xff]
    %v62 = vld [vmem:[%s1 + $0xb0] sm:$0xff]
    %v63 = vld [vmem:[%s1 + $0xb8] sm:$0xff]
    %v64 = vld [vmem:[%s1 + $0xc0] sm:$0xff]
    %v65 = vld [vmem:[%s1 + $0xc8] sm:$0xff]
    %v66 = vld [vmem:[%s1 + $0xd0] sm:$0xff]
    %v67 = vld [vmem:[%s1 + $0xd8] sm:$0xff]
    %v68 = vld [vmem:[%s1 + $0xe0] sm:$0xff]
    %v69 = vld [vmem:[%s1 + $0xe8] sm:$0xff]
    %v70 = vld [vmem:[%s1 + $0xf0] sm:$0xff]
    %v71 = vld [vmem:[%s1 + $0xf8] sm:$0xff]
    %v72 = vld [vmem:[%s1 + $0x100] sm:$0xff]
    %v73 = vld [vmem:[%s1 + $0x108] sm:$0xff]
    %v74 = vld [vmem:[%s1 + $0x110] sm:$0xff]
    %v75 = vld [vmem:[%s1 + $0x118] sm:$0xff]
    %v76 = vld [vmem:[%s1 + $0x120] sm:$0xff]
    %v77 = vld [vmem:[%s1 + $0x128] sm:$0xff]
    %v78 = vld [vmem:[%s1 + $0x130] sm:$0xff]
    %v79 = vld [vmem:[%s1 + $0x138] sm:$0xff]
    %v80 = vld [vmem:[%s1 + $0x140] sm:$0xff]
    %v81 = vld [vmem:[%s1 + $0x148] sm:$0xff]
    %v82 = vld [vmem:[%s1 + $0x150] sm:$0xff]
    %v83 = vld [vmem:[%s1 + $0x158] sm:$0xff]
    %v84 = vld [vmem:[%s1 + $0x160] sm:$0xff]
    %v85 = vld [vmem:[%s1 + $0x168] sm:$0xff]
    %v86 = vld [vmem:[%s1 + $0x170] sm:$0xff]
    %v87 = vld [vmem:[%s1 + $0x178] sm:$0xff]
    %v88 = vld [vmem:[%s1 + $0x180] sm:$0xff]
    %v89 = vld [vmem:[%s1 + $0x188] sm:$0xff]
    %v90 = vld [vmem:[%s1 + $0x190] sm:$0xff]
    %v91 = vld [vmem:[%s1 + $0x198] sm:$0xff]
    %v92 = vld [vmem:[%s1 + $0x1a0] sm:$0xff]
    %v93 = vld [vmem:[%s1 + $0x1a8] sm:$0xff]
    %v94 = vld [vmem:[%s1 + $0x1b0] sm:$0xff]
    %v95 = vld [vmem:[%s1 + $0x1b8] sm:$0xff]
    %v96 = vld [vmem:[%s1 + $0x1c0] sm:$0xff]
    %v97 = vld [vmem:[%s1 + $0x1c8] sm:$0xff]
    %v98 = vld [vmem:[%s1 + $0x1d0] sm:$0xff]
    %v99 = vld [vmem:[%s1 + $0x1d8] sm:$0xff]
    %v100 = vld [vmem:[%s1 + $0x1e0] sm:$0xff]
    %v101 = vld [vmem:[%s1 + $0x1e8] sm:$0xff]
    %v102 = vld [vmem:[%s1 + $0x1f0] sm:$0xff]
    %v103 = vld [vmem:[%s1 + $0x1f8] sm:$0xff]
    %v104 = vld [vmem:[%s1 + $0x200] sm:$0xff]
    %v105 = vld [vmem:[%s1 + $0x208] sm:$0xff]
    %v106 = vld [vmem:[%s1 + $0x210] sm:$0xff]
    %v107 = vld [vmem:[%s1 + $0x218] sm:$0xff]
    %v108 = vld [vmem:[%s1 + $0x220] sm:$0xff]
    %v109 = vld [vmem:[%s1 + $0x228] sm:$0xff]
    %v110 = vld [vmem:[%s1 + $0x230] sm:$0xff]
    %v111 = vld [vmem:[%s1 + $0x238] sm:$0xff]
    %v112 = vld [vmem:[%s1 + $0x240] sm:$0xff]
    %v113 = vld [vmem:[%s1 + $0x248] sm:$0xff]
    %v114 = vld [vmem:[%s1 + $0x250] sm:$0xff]
    %v115 = vld [vmem:[%s1 + $0x258] sm:$0xff]
    %v116 = vld [vmem:[%s1 + $0x260] sm:$0xff]
    %v117 = vld [vmem:[%s1 + $0x268] sm:$0xff]
    %v118 = vld [vmem:[%s1 + $0x270] sm:$0xff]
    %v119 = vld [vmem:[%s1 + $0x278] sm:$0xff]
    %v120 = vld [vmem:[%s1 + $0x280] sm:$0xff]
    %v121 = vld [vmem:[%s1 + $0x288] sm:$0xff]
    %v122 = vld [vmem:[%s1 + $0x290] sm:$0xff]
    %v123 = vld [vmem:[%s1 + $0x298] sm:$0xff]
    %v124 = vld [vmem:[%s1 + $0x2a0] sm:$0xff]
    %v125 = vld [vmem:[%s1 + $0x2a8] sm:$0xff]
    %v126 = vld [vmem:[%s1 + $0x2b0] sm:$0xff]
    %v127 = vld [vmem:[%s1 + $0x2b8] sm:$0xff]
    %v128 = vld [vmem:[%s1 + $0x2c0] sm:$0xff]
    %v129 = vld [vmem:[%s1 + $0x2c8] sm:$0xff]
    %v130 = vld [vmem:[%s1 + $0x2d0] sm:$0xff]
    %v131 = vld [vmem:[%s1 + $0x2d8] sm:$0xff]
    %v132 = vld [vmem:[%s1 + $0x2e0] sm:$0xff]
    %v133 = vld [vmem:[%s1 + $0x2e8] sm:$0xff]
    %v134 = vld [vmem:[%s1 + $0x2f0] sm:$0xff]
    %v135 = vld [vmem:[%s1 + $0x2f8] sm:$0xff]
    %v136 = vld [vmem:[%s1 + $0x300] sm:$0xff]
    %v137 = vld [vmem:[%s1 + $0x308] sm:$0xff]
    %v138 = vld [vmem:[%s2] sm:$0x1]
    %v140 = vlaneseq
    %v141 = vshrl.u32 %v140, 7
    %v142 = vsub.s32 0, %v141
    %v143 = vrot.slane %v138, %v142
    %vm145 = vcmask 130048
    %v147 = vsel %vm145, %v39, 0
    %149 = vmatprep.subr.mxu0 0.0
    %150 = vmatpush1.msra.mxu0 %v55
    %151 = vmatprep.subr.mxu0 0.0
    %152 = vmatpush1.msra.mxu0 %v54
    %153 = vmatprep.subr.mxu0 0.0
    %154 = vmatpush1.msra.mxu0 %v53
    %155 = vmatprep.subr.mxu0 0.0
    %156 = vmatpush1.msra.mxu0 %v52
    %157 = vmatprep.subr.mxu0 0.0
    %158 = vmatpush1.msra.mxu0 %v51
    %159 = vmatprep.subr.mxu0 0.0
    %160 = vmatpush1.msra.mxu0 %v50
    %161 = vmatprep.subr.mxu0 0.0
    %162 = vmatpush1.msra.mxu0 %v49
    %163 = vmatprep.subr.mxu0 0.0
    %164 = vmatpush1.msra.mxu0 %v48
    %165 = vmatprep.subr.mxu0 0.0
    %166 = vmatpush1.msra.mxu0 %v47
    %167 = vmatprep.subr.mxu0 0.0
    %168 = vmatpush1.msra.mxu0 %v46
    %169 = vmatprep.subr.mxu0 0.0
    %170 = vmatpush1.msra.mxu0 %v45
    %171 = vmatprep.subr.mxu0 0.0
    %172 = vmatpush1.msra.mxu0 %v44
    %173 = vmatprep.subr.mxu0 0.0
    %174 = vmatpush1.msra.mxu0 %v43
    %175 = vmatprep.subr.mxu0 0.0
    %176 = vmatpush1.msra.mxu0 %v42
    %177 = vmatprep.subr.mxu0 0.0
    %178 = vmatpush1.msra.mxu0 %v41
    %179 = vmatprep.subr.mxu0 0.0
    %180 = vmatpush1.msra.mxu0 %v40
    %181 = vmatprep.subr.mxu0 0.0
    %182 = vmatpush2.msra.mxu0 %v71
    %183 = vmatprep.subr.mxu0 0.0
    %184 = vmatpush2.msra.mxu0 %v70
    %185 = vmatprep.subr.mxu0 0.0
    %186 = vmatpush2.msra.mxu0 %v69
    %187 = vmatprep.subr.mxu0 0.0
    %188 = vmatpush2.msra.mxu0 %v68
    %189 = vmatprep.subr.mxu0 0.0
    %190 = vmatpush2.msra.mxu0 %v67
    %191 = vmatprep.subr.mxu0 0.0
    %192 = vmatpush2.msra.mxu0 %v66
    %193 = vmatprep.subr.mxu0 0.0
    %194 = vmatpush2.msra.mxu0 %v65
    %195 = vmatprep.subr.mxu0 0.0
    %196 = vmatpush2.msra.mxu0 %v64
    %197 = vmatprep.subr.mxu0 0.0
    %198 = vmatpush2.msra.mxu0 %v63
    %199 = vmatprep.subr.mxu0 0.0
    %200 = vmatpush2.msra.mxu0 %v62
    %201 = vmatprep.subr.mxu0 0.0
    %202 = vmatpush2.msra.mxu0 %v61
    %203 = vmatprep.subr.mxu0 0.0
    %204 = vmatpush2.msra.mxu0 %v60
    %205 = vmatprep.subr.mxu0 0.0
    %206 = vmatpush2.msra.mxu0 %v59
    %207 = vmatprep.subr.mxu0 0.0
    %208 = vmatpush2.msra.mxu0 %v58
    %209 = vmatprep.subr.mxu0 0.0
    %210 = vmatpush2.msra.mxu0 %v57
    %211 = vmatprep.subr.mxu0 0.0
    %212 = vmatpush2.msra.mxu0 %v56
    %213 = vmatprep.mubr.f32.mxu0 %v34
    %214 = vmatmul.mubr.f32.gmra.mxu0 %v33
    %v215 = vpop.f32.mrf.mxu0
    %v216 = vadd.f32 %v143, %v215
    %v217 = vpop.f32.mrf.mxu0
    %218 = vdwg.mxu0
    %219 = vmatprep.subr.mxu0 0.0
    %220 = vmatpush1.msra.mxu0 %v87
    %221 = vmatprep.subr.mxu0 0.0
    %222 = vmatpush1.msra.mxu0 %v86
    %223 = vmatprep.subr.mxu0 0.0
    %224 = vmatpush1.msra.mxu0 %v85
    %225 = vmatprep.subr.mxu0 0.0
    %226 = vmatpush1.msra.mxu0 %v84
    %227 = vmatprep.subr.mxu0 0.0
    %228 = vmatpush1.msra.mxu0 %v83
    %229 = vmatprep.subr.mxu0 0.0
    %230 = vmatpush1.msra.mxu0 %v82
    %231 = vmatprep.subr.mxu0 0.0
    %232 = vmatpush1.msra.mxu0 %v81
    %233 = vmatprep.subr.mxu0 0.0
    %234 = vmatpush1.msra.mxu0 %v80
    %235 = vmatprep.subr.mxu0 0.0
    %236 = vmatpush1.msra.mxu0 %v79
    %237 = vmatprep.subr.mxu0 0.0
    %238 = vmatpush1.msra.mxu0 %v78
    %239 = vmatprep.subr.mxu0 0.0
    %240 = vmatpush1.msra.mxu0 %v77
    %241 = vmatprep.subr.mxu0 0.0
    %242 = vmatpush1.msra.mxu0 %v76
    %243 = vmatprep.subr.mxu0 0.0
    %244 = vmatpush1.msra.mxu0 %v75
    %245 = vmatprep.subr.mxu0 0.0
    %246 = vmatpush1.msra.mxu0 %v74
    %247 = vmatprep.subr.mxu0 0.0
    %248 = vmatpush1.msra.mxu0 %v73
    %249 = vmatprep.subr.mxu0 0.0
    %250 = vmatpush1.msra.mxu0 %v72
    %251 = vmatprep.subr.mxu0 0.0
    %252 = vmatpush2.msra.mxu0 %v103
    %253 = vmatprep.subr.mxu0 0.0
    %254 = vmatpush2.msra.mxu0 %v102
    %255 = vmatprep.subr.mxu0 0.0
    %256 = vmatpush2.msra.mxu0 %v101
    %257 = vmatprep.subr.mxu0 0.0
    %258 = vmatpush2.msra.mxu0 %v100
    %259 = vmatprep.subr.mxu0 0.0
    %260 = vmatpush2.msra.mxu0 %v99
    %261 = vmatprep.subr.mxu0 0.0
    %262 = vmatpush2.msra.mxu0 %v98
    %263 = vmatprep.subr.mxu0 0.0
    %264 = vmatpush2.msra.mxu0 %v97
    %265 = vmatprep.subr.mxu0 0.0
    %266 = vmatpush2.msra.mxu0 %v96
    %267 = vmatprep.subr.mxu0 0.0
    %268 = vmatpush2.msra.mxu0 %v95
    %269 = vmatprep.subr.mxu0 0.0
    %270 = vmatpush2.msra.mxu0 %v94
    %271 = vmatprep.subr.mxu0 0.0
    %272 = vmatpush2.msra.mxu0 %v93
    %273 = vmatprep.subr.mxu0 0.0
    %274 = vmatpush2.msra.mxu0 %v92
    %275 = vmatprep.subr.mxu0 0.0
    %276 = vmatpush2.msra.mxu0 %v91
    %277 = vmatprep.subr.mxu0 0.0
    %278 = vmatpush2.msra.mxu0 %v90
    %279 = vmatprep.subr.mxu0 0.0
    %280 = vmatpush2.msra.mxu0 %v89
    %281 = vmatprep.subr.mxu0 0.0
    %282 = vmatpush2.msra.mxu0 %v88
    %283 = vmatprep.mubr.f32.mxu0 %v36
    %284 = vmatmul.mubr.f32.gmra.mxu0 %v35
    %v285 = vpop.f32.mrf.mxu0
    %v286 = vadd.f32 %v216, %v285
    %v287 = vpop.f32.mrf.mxu0
    %288 = vdwg.mxu0
    %289 = vmatprep.subr.mxu0 0.0
    %290 = vmatpush1.msra.mxu0 %v119
    %291 = vmatprep.subr.mxu0 0.0
    %292 = vmatpush1.msra.mxu0 %v118
    %293 = vmatprep.subr.mxu0 0.0
    %294 = vmatpush1.msra.mxu0 %v117
    %295 = vmatprep.subr.mxu0 0.0
    %296 = vmatpush1.msra.mxu0 %v116
    %297 = vmatprep.subr.mxu0 0.0
    %298 = vmatpush1.msra.mxu0 %v115
    %299 = vmatprep.subr.mxu0 0.0
    %300 = vmatpush1.msra.mxu0 %v114
    %301 = vmatprep.subr.mxu0 0.0
    %302 = vmatpush1.msra.mxu0 %v113
    %303 = vmatprep.subr.mxu0 0.0
    %304 = vmatpush1.msra.mxu0 %v112
    %305 = vmatprep.subr.mxu0 0.0
    %306 = vmatpush1.msra.mxu0 %v111
    %307 = vmatprep.subr.mxu0 0.0
    %308 = vmatpush1.msra.mxu0 %v110
    %309 = vmatprep.subr.mxu0 0.0
    %310 = vmatpush1.msra.mxu0 %v109
    %311 = vmatprep.subr.mxu0 0.0
    %312 = vmatpush1.msra.mxu0 %v108
    %313 = vmatprep.subr.mxu0 0.0
    %314 = vmatpush1.msra.mxu0 %v107
    %315 = vmatprep.subr.mxu0 0.0
    %316 = vmatpush1.msra.mxu0 %v106
    %317 = vmatprep.subr.mxu0 0.0
    %318 = vmatpush1.msra.mxu0 %v105
    %319 = vmatprep.subr.mxu0 0.0
    %320 = vmatpush1.msra.mxu0 %v104
    %321 = vmatprep.subr.mxu0 0.0
    %322 = vmatpush2.msra.mxu0 %v135
    %323 = vmatprep.subr.mxu0 0.0
    %324 = vmatpush2.msra.mxu0 %v134
    %325 = vmatprep.subr.mxu0 0.0
    %326 = vmatpush2.msra.mxu0 %v133
    %327 = vmatprep.subr.mxu0 0.0
    %328 = vmatpush2.msra.mxu0 %v132
    %329 = vmatprep.subr.mxu0 0.0
    %330 = vmatpush2.msra.mxu0 %v131
    %331 = vmatprep.subr.mxu0 0.0
    %332 = vmatpush2.msra.mxu0 %v130
    %333 = vmatprep.subr.mxu0 0.0
    %334 = vmatpush2.msra.mxu0 %v129
    %335 = vmatprep.subr.mxu0 0.0
    %336 = vmatpush2.msra.mxu0 %v128
    %337 = vmatprep.subr.mxu0 0.0
    %338 = vmatpush2.msra.mxu0 %v127
    %339 = vmatprep.subr.mxu0 0.0
    %340 = vmatpush2.msra.mxu0 %v126
    %341 = vmatprep.subr.mxu0 0.0
    %342 = vmatpush2.msra.mxu0 %v125
    %343 = vmatprep.subr.mxu0 0.0
    %344 = vmatpush2.msra.mxu0 %v124
    %345 = vmatprep.subr.mxu0 0.0
    %346 = vmatpush2.msra.mxu0 %v123
    %347 = vmatprep.subr.mxu0 0.0
    %348 = vmatpush2.msra.mxu0 %v122
    %349 = vmatprep.subr.mxu0 0.0
    %350 = vmatpush2.msra.mxu0 %v121
    %351 = vmatprep.subr.mxu0 0.0
    %352 = vmatpush2.msra.mxu0 %v120
    %353 = vmatprep.mubr.f32.mxu0 %v38
    %354 = vmatmul.mubr.f32.gmra.mxu0 %v37
    %v355 = vpop.f32.mrf.mxu0
    %v356 = vadd.f32 %v286, %v355
    %v357 = vpop.f32.mrf.mxu0
    %358 = vdwg.mxu0
    %359 = vmatprep.subr.mxu0 0.0
    %360 = vmatpush1.msra.mxu0 0.0
    %361 = vmatprep.subr.mxu0 0.0
    %362 = vmatpush1.msra.mxu0 0.0
    %363 = vmatprep.subr.mxu0 0.0
    %364 = vmatpush1.msra.mxu0 0.0
    %365 = vmatprep.subr.mxu0 0.0
    %366 = vmatpush1.msra.mxu0 0.0
    %367 = vmatprep.subr.mxu0 0.0
    %368 = vmatpush1.msra.mxu0 0.0
    %369 = vmatprep.subr.mxu0 0.0
    %370 = vmatpush1.msra.mxu0 0.0
    %371 = vmatprep.subr.mxu0 0.0
    %372 = vmatpush1.msra.mxu0 0.0
    %373 = vmatprep.subr.mxu0 0.0
    %374 = vmatpush1.msra.mxu0 0.0
    %375 = vmatprep.subr.mxu0 0.0
    %376 = vmatpush1.msra.mxu0 0.0
    %377 = vmatprep.subr.mxu0 0.0
    %378 = vmatpush1.msra.mxu0 0.0
    %379 = vmatprep.subr.mxu0 0.0
    %380 = vmatpush1.msra.mxu0 0.0
    %381 = vmatprep.subr.mxu0 0.0
    %382 = vmatpush1.msra.mxu0 0.0
    %383 = vmatprep.subr.mxu0 0.0
    %384 = vmatpush1.msra.mxu0 0.0
    %385 = vmatprep.subr.mxu0 0.0
    %386 = vmatpush1.msra.mxu0 0.0
    %387 = vmatprep.subr.mxu0 0.0
    %388 = vmatpush1.msra.mxu0 %v137
    %389 = vmatprep.subr.mxu0 0.0
    %390 = vmatpush1.msra.mxu0 %v136
    %391 = vmatprep.subr.mxu0 0.0
    %392 = vmatpush2.msra.mxu0 0.0
    %393 = vmatprep.subr.mxu0 0.0
    %394 = vmatpush2.msra.mxu0 0.0
    %395 = vmatprep.subr.mxu0 0.0
    %396 = vmatpush2.msra.mxu0 0.0
    %397 = vmatprep.subr.mxu0 0.0
    %398 = vmatpush2.msra.mxu0 0.0
    %399 = vmatprep.subr.mxu0 0.0
    %400 = vmatpush2.msra.mxu0 0.0
    %401 = vmatprep.subr.mxu0 0.0
    %402 = vmatpush2.msra.mxu0 0.0
    %403 = vmatprep.subr.mxu0 0.0
    %404 = vmatpush2.msra.mxu0 0.0
    %405 = vmatprep.subr.mxu0 0.0
    %406 = vmatpush2.msra.mxu0 0.0
    %407 = vmatprep.subr.mxu0 0.0
    %408 = vmatpush2.msra.mxu0 0.0
    %409 = vmatprep.subr.mxu0 0.0
    %410 = vmatpush2.msra.mxu0 0.0
    %411 = vmatprep.subr.mxu0 0.0
    %412 = vmatpush2.msra.mxu0 0.0
    %413 = vmatprep.subr.mxu0 0.0
    %414 = vmatpush2.msra.mxu0 0.0
    %415 = vmatprep.subr.mxu0 0.0
    %416 = vmatpush2.msra.mxu0 0.0
    %417 = vmatprep.subr.mxu0 0.0
    %418 = vmatpush2.msra.mxu0 0.0
    %419 = vmatprep.subr.mxu0 0.0
    %420 = vmatpush2.msra.mxu0 0.0
    %421 = vmatprep.subr.mxu0 0.0
    %422 = vmatpush2.msra.mxu0 0.0
    %423 = vmatprep.mubr.f32.mxu0 0.0
    %424 = vmatmul.mubr.f32.gmra.mxu0 %v147
    %v425 = vpop.f32.mrf.mxu0
    %v426 = vadd.f32 %v356, %v425
    %v427 = vpop.f32.mrf.mxu0
    %428 = vdwg.mxu0
    %v429 = vmax.f32 %v426, 0.0
    %v430 = vld [vmem:[%s3] sm:$0xff]
    %v431 = vld [vmem:[%s3 + $0x8] sm:$0xff]
    %v432 = vld [vmem:[%s3 + $0x10] sm:$0xff]
    %v433 = vld [vmem:[%s3 + $0x18] sm:$0xff]
    %v434 = vld [vmem:[%s3 + $0x20] sm:$0xff]
    %v435 = vld [vmem:[%s3 + $0x28] sm:$0xff]
    %v436 = vld [vmem:[%s3 + $0x30] sm:$0xff]
    %v437 = vld [vmem:[%s3 + $0x38] sm:$0xff]
    %v438 = vld [vmem:[%s4] sm:$0x1]
    %v440 = vlaneseq
    %v441 = vshrl.u32 %v440, 7
    %v442 = vsub.s32 0, %v441
    %v443 = vrot.slane %v438, %v442
    %vm445 = vcmask 523264
    %v447 = vsel %vm445, %v429, 0
    %449 = vmatprep.subr.mxu0 0.0
    %450 = vmatpush1.msra.mxu0 0.0
    %451 = vmatprep.subr.mxu0 0.0
    %452 = vmatpush1.msra.mxu0 0.0
    %453 = vmatprep.subr.mxu0 0.0
    %454 = vmatpush1.msra.mxu0 0.0
    %455 = vmatprep.subr.mxu0 0.0
    %456 = vmatpush1.msra.mxu0 0.0
    %457 = vmatprep.subr.mxu0 0.0
    %458 = vmatpush1.msra.mxu0 0.0
    %459 = vmatprep.subr.mxu0 0.0
    %460 = vmatpush1.msra.mxu0 0.0
    %461 = vmatprep.subr.mxu0 0.0
    %462 = vmatpush1.msra.mxu0 0.0
    %463 = vmatprep.subr.mxu0 0.0
    %464 = vmatpush1.msra.mxu0 0.0
    %465 = vmatprep.subr.mxu0 0.0
    %466 = vmatpush1.msra.mxu0 %v437
    %467 = vmatprep.subr.mxu0 0.0
    %468 = vmatpush1.msra.mxu0 %v436
    %469 = vmatprep.subr.mxu0 0.0
    %470 = vmatpush1.msra.mxu0 %v435
    %471 = vmatprep.subr.mxu0 0.0
    %472 = vmatpush1.msra.mxu0 %v434
    %473 = vmatprep.subr.mxu0 0.0
    %474 = vmatpush1.msra.mxu0 %v433
    %475 = vmatprep.subr.mxu0 0.0
    %476 = vmatpush1.msra.mxu0 %v432
    %477 = vmatprep.subr.mxu0 0.0
    %478 = vmatpush1.msra.mxu0 %v431
    %479 = vmatprep.subr.mxu0 0.0
    %480 = vmatpush1.msra.mxu0 %v430
    %481 = vmatprep.subr.mxu0 0.0
    %482 = vmatpush2.msra.mxu0 0.0
    %483 = vmatprep.subr.mxu0 0.0
    %484 = vmatpush2.msra.mxu0 0.0
    %485 = vmatprep.subr.mxu0 0.0
    %486 = vmatpush2.msra.mxu0 0.0
    %487 = vmatprep.subr.mxu0 0.0
    %488 = vmatpush2.msra.mxu0 0.0
    %489 = vmatprep.subr.mxu0 0.0
    %490 = vmatpush2.msra.mxu0 0.0
    %491 = vmatprep.subr.mxu0 0.0
    %492 = vmatpush2.msra.mxu0 0.0
    %493 = vmatprep.subr.mxu0 0.0
    %494 = vmatpush2.msra.mxu0 0.0
    %495 = vmatprep.subr.mxu0 0.0
    %496 = vmatpush2.msra.mxu0 0.0
    %497 = vmatprep.subr.mxu0 0.0
    %498 = vmatpush2.msra.mxu0 0.0
    %499 = vmatprep.subr.mxu0 0.0
    %500 = vmatpush2.msra.mxu0 0.0
    %501 = vmatprep.subr.mxu0 0.0
    %502 = vmatpush2.msra.mxu0 0.0
    %503 = vmatprep.subr.mxu0 0.0
    %504 = vmatpush2.msra.mxu0 0.0
    %505 = vmatprep.subr.mxu0 0.0
    %506 = vmatpush2.msra.mxu0 0.0
    %507 = vmatprep.subr.mxu0 0.0
    %508 = vmatpush2.msra.mxu0 0.0
    %509 = vmatprep.subr.mxu0 0.0
    %510 = vmatpush2.msra.mxu0 0.0
    %511 = vmatprep.subr.mxu0 0.0
    %512 = vmatpush2.msra.mxu0 0.0
    %513 = vmatprep.mubr.f32.mxu0 0.0
    %514 = vmatmul.mubr.f32.gmra.mxu0 %v447
    %v515 = vpop.f32.mrf.mxu0
    %v516 = vadd.f32 %v443, %v515
    %v517 = vpop.f32.mrf.mxu0
    %518 = vdwg.mxu0
    %v519 = vmax.f32 %v516, 0.0
    %v520 = vld [vmem:[%s5] sm:$0xff]
    %v521 = vld [vmem:[%s5 + $0x8] sm:$0xff]
    %v522 = vld [vmem:[%s5 + $0x10] sm:$0xff]
    %v523 = vld [vmem:[%s5 + $0x18] sm:$0xff]
    %v524 = vld [vmem:[%s5 + $0x20] sm:$0xff]
    %v525 = vld [vmem:[%s5 + $0x28] sm:$0xff]
    %v526 = vld [vmem:[%s5 + $0x30] sm:$0xff]
    %v527 = vld [vmem:[%s5 + $0x38] sm:$0xff]
    %v528 = vld [vmem:[%s6] sm:$0x1]
    %v530 = vlaneseq
    %v531 = vshrl.u32 %v530, 7
    %v532 = vsub.s32 0, %v531
    %v533 = vrot.slane %v528, %v532
    %v536 = vsel %vm445, %v519, 0
    %538 = vmatprep.subr.mxu0 0.0
    %539 = vmatpush1.msra.mxu0 0.0
    %540 = vmatprep.subr.mxu0 0.0
    %541 = vmatpush1.msra.mxu0 0.0
    %542 = vmatprep.subr.mxu0 0.0
    %543 = vmatpush1.msra.mxu0 0.0
    %544 = vmatprep.subr.mxu0 0.0
    %545 = vmatpush1.msra.mxu0 0.0
    %546 = vmatprep.subr.mxu0 0.0
    %547 = vmatpush1.msra.mxu0 0.0
    %548 = vmatprep.subr.mxu0 0.0
    %549 = vmatpush1.msra.mxu0 0.0
    %550 = vmatprep.subr.mxu0 0.0
    %551 = vmatpush1.msra.mxu0 0.0
    %552 = vmatprep.subr.mxu0 0.0
    %553 = vmatpush1.msra.mxu0 0.0
    %554 = vmatprep.subr.mxu0 0.0
    %555 = vmatpush1.msra.mxu0 %v527
    %556 = vmatprep.subr.mxu0 0.0
    %557 = vmatpush1.msra.mxu0 %v526
    %558 = vmatprep.subr.mxu0 0.0
    %559 = vmatpush1.msra.mxu0 %v525
    %560 = vmatprep.subr.mxu0 0.0
    %561 = vmatpush1.msra.mxu0 %v524
    %562 = vmatprep.subr.mxu0 0.0
    %563 = vmatpush1.msra.mxu0 %v523
    %564 = vmatprep.subr.mxu0 0.0
    %565 = vmatpush1.msra.mxu0 %v522
    %566 = vmatprep.subr.mxu0 0.0
    %567 = vmatpush1.msra.mxu0 %v521
    %568 = vmatprep.subr.mxu0 0.0
    %569 = vmatpush1.msra.mxu0 %v520
    %570 = vmatprep.subr.mxu0 0.0
    %571 = vmatpush2.msra.mxu0 0.0
    %572 = vmatprep.subr.mxu0 0.0
    %573 = vmatpush2.msra.mxu0 0.0
    %574 = vmatprep.subr.mxu0 0.0
    %575 = vmatpush2.msra.mxu0 0.0
    %576 = vmatprep.subr.mxu0 0.0
    %577 = vmatpush2.msra.mxu0 0.0
    %578 = vmatprep.subr.mxu0 0.0
    %579 = vmatpush2.msra.mxu0 0.0
    %580 = vmatprep.subr.mxu0 0.0
    %581 = vmatpush2.msra.mxu0 0.0
    %582 = vmatprep.subr.mxu0 0.0
    %583 = vmatpush2.msra.mxu0 0.0
    %584 = vmatprep.subr.mxu0 0.0
    %585 = vmatpush2.msra.mxu0 0.0
    %586 = vmatprep.subr.mxu0 0.0
    %587 = vmatpush2.msra.mxu0 0.0
    %588 = vmatprep.subr.mxu0 0.0
    %589 = vmatpush2.msra.mxu0 0.0
    %590 = vmatprep.subr.mxu0 0.0
    %591 = vmatpush2.msra.mxu0 0.0
    %592 = vmatprep.subr.mxu0 0.0
    %593 = vmatpush2.msra.mxu0 0.0
    %594 = vmatprep.subr.mxu0 0.0
    %595 = vmatpush2.msra.mxu0 0.0
    %596 = vmatprep.subr.mxu0 0.0
    %597 = vmatpush2.msra.mxu0 0.0
    %598 = vmatprep.subr.mxu0 0.0
    %599 = vmatpush2.msra.mxu0 0.0
    %600 = vmatprep.subr.mxu0 0.0
    %601 = vmatpush2.msra.mxu0 0.0
    %602 = vmatprep.mubr.f32.mxu0 0.0
    %603 = vmatmul.mubr.f32.gmra.mxu0 %v536
    %v604 = vpop.f32.mrf.mxu0
    %v605 = vadd.f32 %v533, %v604
    %v606 = vpop.f32.mrf.mxu0
    %607 = vdwg.mxu0
    %v608 = vmax.f32 %v605, 0.0
    %v609 = vld [vmem:[%s7] sm:$0xff]
    %v610 = vld [vmem:[%s7 + $0x8] sm:$0xff]
    %v611 = vld [vmem:[%s7 + $0x10] sm:$0xff]
    %v612 = vld [vmem:[%s7 + $0x18] sm:$0xff]
    %v613 = vld [vmem:[%s7 + $0x20] sm:$0xff]
    %v614 = vld [vmem:[%s7 + $0x28] sm:$0xff]
    %v615 = vld [vmem:[%s7 + $0x30] sm:$0xff]
    %v616 = vld [vmem:[%s7 + $0x38] sm:$0xff]
    %v617 = vld [vmem:[%s8] sm:$0x1]
    %v619 = vlaneseq
    %v620 = vshrl.u32 %v619, 7
    %v621 = vsub.s32 0, %v620
    %v622 = vrot.slane %v617, %v621
    %v625 = vsel %vm445, %v608, 0
    %627 = vmatprep.subr.mxu0 0.0
    %628 = vmatpush1.msra.mxu0 0.0
    %629 = vmatprep.subr.mxu0 0.0
    %630 = vmatpush1.msra.mxu0 0.0
    %631 = vmatprep.subr.mxu0 0.0
    %632 = vmatpush1.msra.mxu0 0.0
    %633 = vmatprep.subr.mxu0 0.0
    %634 = vmatpush1.msra.mxu0 0.0
    %635 = vmatprep.subr.mxu0 0.0
    %636 = vmatpush1.msra.mxu0 0.0
    %637 = vmatprep.subr.mxu0 0.0
    %638 = vmatpush1.msra.mxu0 0.0
    %639 = vmatprep.subr.mxu0 0.0
    %640 = vmatpush1.msra.mxu0 0.0
    %641 = vmatprep.subr.mxu0 0.0
    %642 = vmatpush1.msra.mxu0 0.0
    %643 = vmatprep.subr.mxu0 0.0
    %644 = vmatpush1.msra.mxu0 %v616
    %645 = vmatprep.subr.mxu0 0.0
    %646 = vmatpush1.msra.mxu0 %v615
    %647 = vmatprep.subr.mxu0 0.0
    %648 = vmatpush1.msra.mxu0 %v614
    %649 = vmatprep.subr.mxu0 0.0
    %650 = vmatpush1.msra.mxu0 %v613
    %651 = vmatprep.subr.mxu0 0.0
    %652 = vmatpush1.msra.mxu0 %v612
    %653 = vmatprep.subr.mxu0 0.0
    %654 = vmatpush1.msra.mxu0 %v611
    %655 = vmatprep.subr.mxu0 0.0
    %656 = vmatpush1.msra.mxu0 %v610
    %657 = vmatprep.subr.mxu0 0.0
    %658 = vmatpush1.msra.mxu0 %v609
    %659 = vmatprep.subr.mxu0 0.0
    %660 = vmatpush2.msra.mxu0 0.0
    %661 = vmatprep.subr.mxu0 0.0
    %662 = vmatpush2.msra.mxu0 0.0
    %663 = vmatprep.subr.mxu0 0.0
    %664 = vmatpush2.msra.mxu0 0.0
    %665 = vmatprep.subr.mxu0 0.0
    %666 = vmatpush2.msra.mxu0 0.0
    %667 = vmatprep.subr.mxu0 0.0
    %668 = vmatpush2.msra.mxu0 0.0
    %669 = vmatprep.subr.mxu0 0.0
    %670 = vmatpush2.msra.mxu0 0.0
    %671 = vmatprep.subr.mxu0 0.0
    %672 = vmatpush2.msra.mxu0 0.0
    %673 = vmatprep.subr.mxu0 0.0
    %674 = vmatpush2.msra.mxu0 0.0
    %675 = vmatprep.subr.mxu0 0.0
    %676 = vmatpush2.msra.mxu0 0.0
    %677 = vmatprep.subr.mxu0 0.0
    %678 = vmatpush2.msra.mxu0 0.0
    %679 = vmatprep.subr.mxu0 0.0
    %680 = vmatpush2.msra.mxu0 0.0
    %681 = vmatprep.subr.mxu0 0.0
    %682 = vmatpush2.msra.mxu0 0.0
    %683 = vmatprep.subr.mxu0 0.0
    %684 = vmatpush2.msra.mxu0 0.0
    %685 = vmatprep.subr.mxu0 0.0
    %686 = vmatpush2.msra.mxu0 0.0
    %687 = vmatprep.subr.mxu0 0.0
    %688 = vmatpush2.msra.mxu0 0.0
    %689 = vmatprep.subr.mxu0 0.0
    %690 = vmatpush2.msra.mxu0 0.0
    %691 = vmatprep.mubr.f32.mxu0 0.0
    %692 = vmatmul.mubr.f32.gmra.mxu0 %v625
    %v693 = vpop.f32.mrf.mxu0
    %v694 = vadd.f32 %v622, %v693
    %v695 = vpop.f32.mrf.mxu0
    %696 = vdwg.mxu0
    %697 = vmax.xlane.f32.xlu0 %v694
    %v698 = vpop.xlane.xlu0 %697
    %v699 = vsub.f32 %v694, %v698
    %v700 = vmul.f32 %v699, 1.442695
    %v701 = vpow.pop %v700
    %702 = vadd.xlane.f32.xlu0 %v701
    %v703 = vpop.xlane.xlu0 %702
    %v704 = vlog2.pop %v703
    %v705 = vmul.f32 %v704, 0.6931472
    %v706 = vsub.f32 %v699, %v705
    %707 = vst [vmem:[#allocation2] sm:$0xff] %v706
    // Predicated region
    $region38: #{tpu_custom_call.1} parent=1 // pred_check
      _
    $region39: #{tpu_custom_call.1} parent=1 // pred_check_branch
      %709 = sbr.rel (0) target = $region41
    $region40: #{tpu_custom_call.1} parent=1 // pred_region
      %s711 = ssub.s32 128, 128
      %712 = vsyncadd [#allocation3], %s711
      %s714 = sshll.u32 [#allocation2], 4
      %s715 = int_to_ptr.vmem [resolvable:$true] %s714
      %717 = dma.vmem_to_hbm [thread:$0]  %s715, 128, %s9, [#allocation3]
    $region41: #{tpu_custom_call.1} parent=1 // pred_fallthru
      _
    // Predicated region
    $region42: #{tpu_custom_call.1} parent=1 // pred_check
      _
    $region43: #{tpu_custom_call.1} parent=1 // pred_check_branch
      %719 = sbr.rel (0) target = $region45
    $region44: #{tpu_custom_call.1} parent=1 // pred_region
      %720 = dma.done [#allocation3], 128
    $region45: #{tpu_custom_call.1} parent=1 // pred_fallthru
      _
    %721 = vsyncpa [#allocation3], 1

</llo_original>
